<compile_context>
chip_gen: v6e
topology: v6e:2x2x1
jax: 0.10.0
libtpu: 0.0.40
codegen_flags: <defaults>
</compile_context>

<pallas_src>
import functools

import jax
import jax.numpy as jnp
from jax import lax
from jax.experimental import pallas as pl
from jax.experimental.pallas import tpu as pltpu

_LANE = 128
_SUBLANE = 8


def _grw_ce_kernel(logit_ref, target_ref, wt_ref, out_ref, *, n_rows):
    # logit_ref : (TILE_N, C) float      -- one batch tile of logits
    # target_ref: (TILE_N, 1) int32      -- class index per row
    # wt_ref    : (TILE_N, 1) float32    -- host-gathered per-row weight w[t_i]
    # out_ref   : (1, 8, 128) float32    -- sublane 0: partial numerator splat,
    #                                       sublanes 1..7: partial denominator splat
    x = logit_ref[...].astype(jnp.float32)
    t = target_ref[...]
    w_t = wt_ref[...].astype(jnp.float32)

    tile_n, c = x.shape
    pid = pl.program_id(0)

    # x[t] via a broadcasted compare against a (1, C) iota (no one-hot f32,
    # no per-element multiply).
    col = lax.broadcasted_iota(jnp.int32, (1, c), 1)
    x_t = jnp.sum(jnp.where(col == t, x, 0.0), axis=1, keepdims=True)   # (TILE_N, 1)

    # numerically stable log-sum-exp over classes
    m = jnp.max(x, axis=1, keepdims=True)                               # (TILE_N, 1)
    lse = m + jnp.log(jnp.sum(jnp.exp(x - m), axis=1, keepdims=True))
    # TODO(synk): if a v7x bundle dump shows the single EUP slot binding,
    # compute exp((x - m).astype(bf16)) with f32 accumulation.

    # mask rows past the true batch size in the last (partial) block; the
    # select also kills any NaN/Inf coming from unspecified padded rows.
    row = lax.broadcasted_iota(jnp.int32, (tile_n, 1), 0)
    valid = (pid * tile_n + row) < n_rows

    wnll = jnp.where(valid, w_t * (lse - x_t), 0.0)                     # w[t] * (-logp[t])
    wsum = jnp.where(valid, w_t, 0.0)

    num = jnp.sum(wnll)
    den = jnp.sum(wsum)

    # single lane-dense full-block store: sublane 0 = num, sublanes 1..7 = den
    srow = lax.broadcasted_iota(jnp.int32, (_SUBLANE, _LANE), 0)
    out_ref[...] = jnp.where(srow == 0, num, den)[None, :, :]


def _pick_tiling(n, c, itemsize):
    """Dtype-aware, VMEM-budget-driven batch tile size."""
    try:
        info = pltpu.get_tpu_info()
        vmem_cap = int(getattr(info, "vmem_capacity_bytes", 64 << 20))
    except Exception:  # interpret mode / older runtimes
        vmem_cap = 64 << 20
    # v7x (64 MiB/TC) -> 48 MiB limit; v5e/v6e (128 MiB) -> 96 MiB limit.
    vmem_limit = max(32 << 20, min(vmem_cap * 3 // 4, 96 << 20))
    # one block <= min(8 MiB, limit/8): ~6 MiB on v7x, 8 MiB on v5e/v6e.
    block_bytes = min(8 << 20, vmem_limit // 8)

    # VMEM footprint per batch row of one tile: the logits row (input dtype)
    # plus two lane-padded (tile_n, 1) scalar buffers (target + w[t]),
    # each padded to 128 lanes x 4 B.
    row_bytes = c * itemsize + 2 * _LANE * 4

    if n * row_bytes <= (1 << 20):
        # tiny input: a single full-batch block (full-dim block is always legal)
        return n, vmem_limit

    cap = max(_SUBLANE, (block_bytes // row_bytes) // _SUBLANE * _SUBLANE)
    # force >= ~4 grid steps so the input DMA overlaps with compute
    steps_cap = max(_SUBLANE, (n // 4) // _SUBLANE * _SUBLANE)
    tile_n = min(cap, steps_cap)
    if tile_n >= n:
        tile_n = n
    return tile_n, vmem_limit


def generalized_reweight_loss(logit, target, per_cls_weights, *, tile_n=None):
    """logit: (N, C) float, target: (N,) int, per_cls_weights: (C,) float."""
    n, c = logit.shape
    target_2d = target.astype(jnp.int32).reshape(n, 1)
    # host-side O(N) gather of the per-row class weight
    w_t = per_cls_weights.astype(jnp.float32)[target.astype(jnp.int32)].reshape(n, 1)

    auto_tile_n, vmem_limit = _pick_tiling(n, c, jnp.dtype(logit.dtype).itemsize)
    if tile_n is None:
        tile_n = auto_tile_n
    else:
        tile_n = min(tile_n, n)
        if tile_n != n:
            tile_n = max(_SUBLANE, tile_n // _SUBLANE * _SUBLANE)
    grid_n = pl.cdiv(n, tile_n)
    # TODO(synk): for C << 128, lane-pack k=128//C batch rows per vreg row with
    # segmented reductions; for vocab-scale C, add a class grid axis with an
    # online (flash-style) log-sum-exp.

    parts = pl.pallas_call(
        functools.partial(_grw_ce_kernel, n_rows=n),
        grid=(grid_n,),
        in_specs=[
            pl.BlockSpec((tile_n, c), lambda i: (i, 0)),
            pl.BlockSpec((tile_n, 1), lambda i: (i, 0)),
            pl.BlockSpec((tile_n, 1), lambda i: (i, 0)),
        ],
        out_specs=pl.BlockSpec((1, _SUBLANE, _LANE), lambda i: (i, 0, 0)),
        out_shape=jax.ShapeDtypeStruct((grid_n, _SUBLANE, _LANE), jnp.float32),
        compiler_params=pltpu.CompilerParams(
            dimension_semantics=("parallel",),
            vmem_limit_bytes=int(vmem_limit),
        ),
    )(logit, target_2d, w_t)

    num = jnp.sum(parts[:, 0, 0])
    den = jnp.sum(parts[:, 1, 0])
    return num / den


def make_per_cls_weights(cls_num_list, exp_scale=1.0):
    """Mirror of the PyTorch __init__: weights from class frequencies."""
    cls_num_list = jnp.asarray(cls_num_list, jnp.float32)
    cls_num_ratio = cls_num_list / jnp.sum(cls_num_list)
    per_cls_weights = 1.0 / cls_num_ratio ** exp_scale
    per_cls_weights = per_cls_weights / jnp.mean(per_cls_weights)
    return per_cls_weights


def _reference_loss(logit, target, per_cls_weights):
    logp = jax.nn.log_softmax(logit.astype(jnp.float32), axis=-1)
    w_t = per_cls_weights[target]
    n = logit.shape[0]
    return jnp.sum(-w_t * logp[jnp.arange(n), target]) / jnp.sum(w_t)


if __name__ == "__main__":
    key = jax.random.PRNGKey(0)
    k1, k2, k3, k4 = jax.random.split(key, 4)

    # ---- small test matching the module's expected shapes -------------------
    N, C = 8, 16  # batch, num classes
    cls_num_list = jnp.array([100.0 / (i + 1) for i in range(C)], jnp.float32)
    per_cls_weights = make_per_cls_weights(cls_num_list, exp_scale=1.0)

    logit = jax.random.normal(k1, (N, C), dtype=jnp.float32)
    target = jax.random.randint(k2, (N,), 0, C, dtype=jnp.int32)

    loss = generalized_reweight_loss(logit, target, per_cls_weights)
    jax.block_until_ready(loss)
    ref = _reference_loss(logit, target, per_cls_weights)
    assert jnp.allclose(loss, ref, rtol=1e-5, atol=1e-5), (loss, ref)

    # ---- multi-block test (exercises the grid + partial-block masking) ------
    N2 = 150
    logit2 = jax.random.normal(k3, (N2, C), dtype=jnp.float32)
    target2 = jax.random.randint(k4, (N2,), 0, C, dtype=jnp.int32)

    loss2 = generalized_reweight_loss(logit2, target2, per_cls_weights, tile_n=64)
    jax.block_until_ready(loss2)
    ref2 = _reference_loss(logit2, target2, per_cls_weights)
    assert jnp.allclose(loss2, ref2, rtol=1e-5, atol=1e-5), (loss2, ref2)

    print("KERNEL_OK")
</pallas_src>

<mosaic_0001>
module attributes {stable_mosaic.version = 11 : i64} {
  func.func @_grw_ce_kernel(%arg0: i32, %arg1: memref<8x16xf32, #tpu.memory_space<vmem>>, %arg2: memref<8x1xi32, #tpu.memory_space<vmem>>, %arg3: memref<8x1xf32, #tpu.memory_space<vmem>>, %arg4: memref<1x8x128xf32, #tpu.memory_space<vmem>>) attributes {dimension_semantics = [#tpu.dimension_semantics<parallel>], iteration_bounds = array<i64: 1>, scalar_prefetch = 0 : i64, scratch_operands = 0 : i64, tpu.core_type = #tpu.core_type<tc>, window_params = [{transform_indices = @transform_0, window_bounds = array<i64: 8, 16>}, {transform_indices = @transform_1, window_bounds = array<i64: 8, 1>}, {transform_indices = @transform_2, window_bounds = array<i64: 8, 1>}, {transform_indices = @transform_3, window_bounds = array<i64: 1, 8, 128>}]} {
    %c0 = arith.constant 0 : index
    %c0_0 = arith.constant 0 : index
    %0 = vector.load %arg1[%c0, %c0_0] : memref<8x16xf32, #tpu.memory_space<vmem>>, vector<8x16xf32>
    %c0_1 = arith.constant 0 : index
    %c0_2 = arith.constant 0 : index
    %1 = vector.load %arg2[%c0_1, %c0_2] : memref<8x1xi32, #tpu.memory_space<vmem>>, vector<8x1xi32>
    %c0_3 = arith.constant 0 : index
    %c0_4 = arith.constant 0 : index
    %2 = vector.load %arg3[%c0_3, %c0_4] : memref<8x1xf32, #tpu.memory_space<vmem>>, vector<8x1xf32>
    %3 = tpu.iota {dimensions = array<i32: 1>} : vector<1x16xi32>
    %4 = vector.broadcast %3 : vector<1x16xi32> to vector<8x16xi32>
    %5 = vector.broadcast %1 : vector<8x1xi32> to vector<8x16xi32>
    %6 = arith.cmpi eq, %4, %5 : vector<8x16xi32>
    %cst = arith.constant 0.000000e+00 : f32
    %7 = vector.broadcast %cst : f32 to vector<8x16xf32>
    %8 = arith.select %6, %0, %7 : vector<8x16xi1>, vector<8x16xf32>
    %cst_5 = arith.constant dense<0.000000e+00> : vector<8xf32>
    %9 = vector.multi_reduction <add>, %8, %cst_5 [1] : vector<8x16xf32> to vector<8xf32>
    %10 = vector.shape_cast %9 : vector<8xf32> to vector<8x1xf32>
    %cst_6 = arith.constant dense<0xFF800000> : vector<8xf32>
    %11 = vector.multi_reduction <maximumf>, %0, %cst_6 [1] : vector<8x16xf32> to vector<8xf32>
    %12 = vector.shape_cast %11 : vector<8xf32> to vector<8x1xf32>
    %13 = vector.broadcast %12 : vector<8x1xf32> to vector<8x16xf32>
    %14 = arith.subf %0, %13 : vector<8x16xf32>
    %15 = math.exp %14 : vector<8x16xf32>
    %cst_7 = arith.constant dense<0.000000e+00> : vector<8xf32>
    %16 = vector.multi_reduction <add>, %15, %cst_7 [1] : vector<8x16xf32> to vector<8xf32>
    %17 = vector.shape_cast %16 : vector<8xf32> to vector<8x1xf32>
    %18 = math.log %17 : vector<8x1xf32>
    %19 = arith.addf %12, %18 : vector<8x1xf32>
    %20 = tpu.iota {dimensions = array<i32: 0>} : vector<8x1xi32>
    %c8_i32 = arith.constant 8 : i32
    %21 = arith.muli %arg0, %c8_i32 : i32
    %22 = vector.broadcast %21 : i32 to vector<8x1xi32>
    %23 = arith.addi %22, %20 : vector<8x1xi32>
    %c8_i32_8 = arith.constant 8 : i32
    %24 = vector.broadcast %c8_i32_8 : i32 to vector<8x1xi32>
    %25 = arith.cmpi slt, %23, %24 : vector<8x1xi32>
    %26 = arith.subf %19, %10 : vector<8x1xf32>
    %27 = arith.mulf %2, %26 : vector<8x1xf32>
    %cst_9 = arith.constant 0.000000e+00 : f32
    %28 = vector.broadcast %cst_9 : f32 to vector<8x1xf32>
    %29 = arith.select %25, %27, %28 : vector<8x1xi1>, vector<8x1xf32>
    %cst_10 = arith.constant 0.000000e+00 : f32
    %30 = vector.broadcast %cst_10 : f32 to vector<8x1xf32>
    %31 = arith.select %25, %2, %30 : vector<8x1xi1>, vector<8x1xf32>
    %32 = vector.shape_cast %29 : vector<8x1xf32> to vector<1x8x1xf32>
    %cst_11 = arith.constant dense<0.000000e+00> : vector<1xf32>
    %33 = vector.multi_reduction <add>, %32, %cst_11 [1, 2] : vector<1x8x1xf32> to vector<1xf32>
    %34 = vector.shape_cast %33 : vector<1xf32> to vector<1x1x1xf32>
    %35 = vector.extract %34[0, 0, 0] : f32 from vector<1x1x1xf32>
    %36 = vector.shape_cast %31 : vector<8x1xf32> to vector<1x8x1xf32>
    %cst_12 = arith.constant dense<0.000000e+00> : vector<1xf32>
    %37 = vector.multi_reduction <add>, %36, %cst_12 [1, 2] : vector<1x8x1xf32> to vector<1xf32>
    %38 = vector.shape_cast %37 : vector<1xf32> to vector<1x1x1xf32>
    %39 = vector.extract %38[0, 0, 0] : f32 from vector<1x1x1xf32>
    %40 = tpu.iota {dimensions = array<i32: 0>} : vector<8x128xi32>
    %c0_i32 = arith.constant 0 : i32
    %41 = vector.broadcast %c0_i32 : i32 to vector<8x128xi32>
    %42 = arith.cmpi eq, %40, %41 : vector<8x128xi32>
    %43 = vector.broadcast %35 : f32 to vector<8x128xf32>
    %44 = vector.broadcast %39 : f32 to vector<8x128xf32>
    %45 = arith.select %42, %43, %44 : vector<8x128xi1>, vector<8x128xf32>
    %46 = vector.shape_cast %45 : vector<8x128xf32> to vector<1x8x128xf32>
    %c0_13 = arith.constant 0 : index
    %c0_14 = arith.constant 0 : index
    %c0_15 = arith.constant 0 : index
    %47 = vector.load %arg4[%c0_13, %c0_14, %c0_15] : memref<1x8x128xf32, #tpu.memory_space<vmem>>, vector<1x8x128xf32>
    tpu.vector_store %arg4[%c0_13, %c0_14, %c0_15], %46 {strides = array<i32>} : memref<1x8x128xf32, #tpu.memory_space<vmem>>, vector<1x8x128xf32>,
    return
  }
  func.func @transform_0(%arg0: i32) -> (i32, i32) {
    %c0_i32 = arith.constant 0 : i32
    %c0_i32_0 = arith.constant 0 : i32
    return %arg0, %c0_i32 : i32, i32
  }
  func.func @transform_1(%arg0: i32) -> (i32, i32) {
    %c0_i32 = arith.constant 0 : i32
    %c0_i32_0 = arith.constant 0 : i32
    return %arg0, %c0_i32 : i32, i32
  }
  func.func @transform_2(%arg0: i32) -> (i32, i32) {
    %c0_i32 = arith.constant 0 : i32
    %c0_i32_0 = arith.constant 0 : i32
    return %arg0, %c0_i32 : i32, i32
  }
  func.func @transform_3(%arg0: i32) -> (i32, i32, i32) {
    %c0_i32 = arith.constant 0 : i32
    %c0_i32_0 = arith.constant 0 : i32
    %c0_i32_1 = arith.constant 0 : i32
    return %arg0, %c0_i32, %c0_i32_0 : i32, i32, i32
  }
}

</mosaic_0001>

<llo_original>
// kernel: tpu_custom_call.1
$region0: #{tpu_custom_call.1}
  #allocation0 [shape = 'u32[]', space=smem, size = 0x4, offset = 0x4, fixed_abs, tag = 'smem constant byte address 0x4 - core index']
  #allocation1 [shape = 'u32[144,128]{1,0:T(1,128)}', space=vmem, size = 0x12000, scoped, tag = 'internal scratch']
  %s0 = inlined_call_operand.vmem [shape: f32[8,16], index: 0, kind: input, shape index: {}]
  %s1 = inlined_call_operand.vmem [shape: s32[8,1], index: 1, kind: input, shape index: {}]
  %s2 = inlined_call_operand.vmem [shape: f32[8,1], index: 2, kind: input, shape index: {}]
  %s3 = inlined_call_operand.hbm [shape: f32[1,8,128], index: 3, kind: output, shape index: {}]
  %s4 = sld [smem:[#allocation0]]
  $region22: #{tpu_custom_call.1} parent=0
    _
  %s6 = ssub.s32 1, %s4
  %s7 = scalar_select 0, %s6, %s4
  $region1: #{tpu_custom_call.1} parent=0
    #allocation2 [shape = 'u8[4096]{0}', space=vmem, size = 0x1000, scoped, tag = 'output window, operand 0, single buffered']
    #allocation3 [shape = 's32[1]{0}', space=sflag, size = 0x4, scoped, tag = 'scoped memory for tpu_custom_call.1']
    %8 = vsyncpa [#allocation3], 0
    // Predicated region
    $region2: #{tpu_custom_call.1} parent=1 // pred_check
      _
    $region3: #{tpu_custom_call.1} parent=1 // pred_check_branch
      %10 = sbr.rel (0) target = $region5
    $region4: #{tpu_custom_call.1} parent=1 // pred_region
      _
    $region5: #{tpu_custom_call.1} parent=1 // pred_fallthru
      _
    // Predicated region
    $region6: #{tpu_custom_call.1} parent=1 // pred_check
      _
    $region7: #{tpu_custom_call.1} parent=1 // pred_check_branch
      %12 = sbr.rel (0) target = $region9
    $region8: #{tpu_custom_call.1} parent=1 // pred_region
      _
    $region9: #{tpu_custom_call.1} parent=1 // pred_fallthru
      _
    // Predicated region
    $region10: #{tpu_custom_call.1} parent=1 // pred_check
      _
    $region11: #{tpu_custom_call.1} parent=1 // pred_check_branch
      %14 = sbr.rel (0) target = $region13
    $region12: #{tpu_custom_call.1} parent=1 // pred_region
      _
    $region13: #{tpu_custom_call.1} parent=1 // pred_fallthru
      _
    %v15 = vld [vmem:[%s0] sm:$0xff]
    %v16 = vld [vmem:[%s1] sm:$0xff]
    %v17 = vld [vmem:[%s2] sm:$0xff]
    %v18 = vlaneseq
    %v19 = vand.u32 %v18, 127
    %20 = vset.pattern.permute.xlu0 0
    %21 = vperm.xlu0 %20, %v16
    %v22 = vpop.permute.xlu0 %21
    %vm23 = vcmp.eq.s32.totalorder %v19, %v22
    %v24 = vsel %vm23, %v15, 0.0
    %vm25 = vcmask 130048
    %v26 = vsel %vm25, %v24, 0.0
    %27 = vadd.xlane.f32.xlu0 %v26
    %v28 = vpop.xlane.xlu0 %27
    %v29 = vsel %vm25, %v15, -inf
    %30 = vmax.xlane.f32.xlu0 %v29
    %v31 = vpop.xlane.xlu0 %30
    %v32 = vsub.f32 %v15, %v31
    %v33 = vmul.f32 %v32, 1.442695
    %v34 = vpow.pop %v33
    %v35 = vsel %vm25, %v34, 0.0
    %36 = vadd.xlane.f32.xlu0 %v35
    %v37 = vpop.xlane.xlu0 %36
    %v38 = vlog2.pop %v37
    %v39 = vmul.f32 %v38, 0.6931472
    %v40 = vadd.f32 %v31, %v39
    %v41 = vlaneseq
    %v42 = vshrl.u32 %v41, 7
    %s43 = smul.u32 0, 8
    %v44 = vstv %s43
    %v45 = vadd.s32 %v44, %v42
    %vm46 = vcmp.lt.s32.totalorder %v45, 8
    %v47 = vsub.f32 %v40, %v28
    %v48 = vmul.f32 %v17, %v47
    %v49 = vsel %vm46, %v48, 0.0
    %v50 = vsel %vm46, %v17, 0.0
    %vm51 = vcmask 7168
    %v52 = vsel %vm51, %v49, 0.0
    %53 = vadd.xlane.f32.xlu0 %v52
    %v54 = vpop.xlane.xlu0 %53
    %v55 = vrot.slane %v54, 4
    %v56 = vadd.f32 %v54, %v55
    %v57 = vrot.slane %v56, 2
    %v58 = vadd.f32 %v56, %v57
    %v59 = vrot.slane %v58, 1
    %v60 = vadd.f32 %v58, %v59
    %s61 = vtos %v60
    %v62 = vsel %vm51, %v50, 0.0
    %63 = vadd.xlane.f32.xlu0 %v62
    %v64 = vpop.xlane.xlu0 %63
    %v65 = vrot.slane %v64, 4
    %v66 = vadd.f32 %v64, %v65
    %v67 = vrot.slane %v66, 2
    %v68 = vadd.f32 %v66, %v67
    %v69 = vrot.slane %v68, 1
    %v70 = vadd.f32 %v68, %v69
    %s71 = vtos %v70
    %vm72 = vcmp.eq.s32.totalorder %v42, 0
    %v73 = vstv %s61
    %v74 = vstv %s71
    %v75 = vsel %vm72, %v73, %v74
    %76 = vst [vmem:[#allocation2] sm:$0xff] %v75
    // Predicated region
    $region14: #{tpu_custom_call.1} parent=1 // pred_check
      _
    $region15: #{tpu_custom_call.1} parent=1 // pred_check_branch
      %78 = sbr.rel (0) target = $region17
    $region16: #{tpu_custom_call.1} parent=1 // pred_region
      %s80 = ssub.s32 128, 128
      %81 = vsyncadd [#allocation3], %s80
      %s83 = sshll.u32 [#allocation2], 4
      %s84 = int_to_ptr.vmem [resolvable:$true] %s83
      %86 = dma.vmem_to_hbm [thread:$0]  %s84, 128, %s3, [#allocation3]
    $region17: #{tpu_custom_call.1} parent=1 // pred_fallthru
      _
    // Predicated region
    $region18: #{tpu_custom_call.1} parent=1 // pred_check
      _
    $region19: #{tpu_custom_call.1} parent=1 // pred_check_branch
      %88 = sbr.rel (0) target = $region21
    $region20: #{tpu_custom_call.1} parent=1 // pred_region
      %89 = dma.done [#allocation3], 128
    $region21: #{tpu_custom_call.1} parent=1 // pred_fallthru
      _
    %90 = vsyncpa [#allocation3], 1

</llo_original>
